<compile_context>
chip_gen: v7x
topology: tpu7x:2x2x1
jax: 0.10.0
libtpu: 0.0.40
codegen_flags: <defaults>
</compile_context>

<pallas_src>
import jax
import jax.numpy as jnp
from jax.experimental import pallas as pl
from jax.experimental.pallas import tpu as pltpu


def ge_kernel(x_ref, w_ref, shift_ref, out_ref):
    # x_ref / out_ref : (Tb, Tc, HW)   native dtype
    # w_ref           : (Tc, HW)       f32 depthwise weights with BN scale folded in
    # shift_ref       : (Tc, 1)        f32 folded BN shift (+ conv bias)
    x = x_ref[...]
    w = w_ref[...]

    # Per-(b, c) dot product along the lane (HW) axis, accumulated in f32
    # (XLU lane reduction; this kernel is HBM-bandwidth-bound, not compute).
    acc = jnp.sum(x.astype(jnp.float32) * w[None, :, :],
                  axis=-1, keepdims=True)                    # (Tb, Tc, 1) f32

    # Folded eval-mode BatchNorm (+ conv bias) then sigmoid gate, in f32.
    gate = jax.nn.sigmoid(acc + shift_ref[...][None, :, :])  # (Tb, Tc, 1) f32

    # Excite: broadcast multiply over the lane axis in x's NATIVE dtype.
    out_ref[...] = x * gate.astype(x.dtype)


def _vmem_budgets():
    """Return (per-block budget bytes, vmem_limit_bytes) per TPU generation."""
    try:
        cap = pltpu.get_tpu_info().vmem_capacity_bytes
    except Exception:
        cap = 128 * 1024 * 1024
    if cap <= 64 * 1024 * 1024:
        # v7x: 64 MiB physical VMEM -> bigger blocks to amortize per-step
        # overhead at 3.2 TB/s HBM, but keep total live well under the ceiling.
        return 4 * 1024 * 1024, 48 * 1024 * 1024
    # v5e / v6e (128 MiB physical): 2 MiB blocks already hit ~85% of roofline.
    return 2 * 1024 * 1024, 32 * 1024 * 1024


def _choose_tiles(B, C, HW, itemsize, block_budget, vmem_limit):
    """Pick (Tb, Tc) so each x block is ~block_budget and tiling stays legal."""
    row_bytes = HW * itemsize

    # Channel tile: largest multiple of 8 whose (1, tc, HW) slab fits the block
    # budget (ragged last block is fine -- the grid uses pl.cdiv and Pallas
    # masks it). Full-extent C is always tiling-legal, so small C falls back
    # to C directly.
    if C <= 8:
        tc = C
    else:
        tc = (block_budget // max(row_bytes, 1)) // 8 * 8
        tc = max(8, min(tc, C))
        if tc >= C:
            tc = C

    def live_bytes(tb):
        data_blk = tb * tc * row_bytes     # one x block (== one out block)
        w_blk = tc * HW * 4                # folded f32 weight block
        return 2 * (2 * data_blk) + 2 * w_blk  # double-buffered in + out + weights

    # Batch tile: fold batches while the x block stays under budget and total
    # live VMEM (double-buffered) keeps headroom under the scoped limit.
    live_budget = (vmem_limit * 3) // 4
    tb = 1
    while (tb < B and B % (tb * 2) == 0
           and (tb * 2) * tc * row_bytes <= block_budget
           and live_bytes(tb * 2) <= live_budget):
        tb *= 2
    return tb, tc


def ge_layer(x_nchw, conv_w, conv_b, gamma, beta, running_mean, running_var,
             eps=1e-5):
    B, C, H, W = x_nchw.shape
    HW = H * W

    # Contiguous reshapes only (metadata-level, no extra HBM pass).
    x = x_nchw.reshape(B, C, HW)

    # Fold eval-mode BN scale into the depthwise weights and the remaining
    # affine (conv bias + BN shift) into a per-channel shift, all in f32.
    scale = (gamma / jnp.sqrt(running_var + eps)).astype(jnp.float32)       # (C,)
    w_scaled = conv_w.reshape(C, HW).astype(jnp.float32) * scale[:, None]   # (C, HW)
    shift = (beta.astype(jnp.float32)
             + (conv_b - running_mean).astype(jnp.float32) * scale)         # (C,)
    shift = shift.reshape(C, 1)

    itemsize = jnp.dtype(x_nchw.dtype).itemsize
    block_budget, vmem_limit = _vmem_budgets()
    tb, tc = _choose_tiles(B, C, HW, itemsize, block_budget, vmem_limit)

    nc = pl.cdiv(C, tc)
    nb = B // tb

    if nc >= 2:
        # Batch innermost: weight / shift block indices are constant across the
        # inner batch steps, so Pallas keeps them resident (no re-DMA).
        grid = (nc, nb)
        x_map = lambda c, b: (b, c, 0)
        w_map = lambda c, b: (c, 0)
        s_map = lambda c, b: (c, 0)
    else:
        # Single channel block: weights are resident regardless of ordering;
        # lead with batch so megacore (v7x) shards a non-trivial axis.
        grid = (nb, nc)
        x_map = lambda b, c: (b, c, 0)
        w_map = lambda b, c: (c, 0)
        s_map = lambda b, c: (c, 0)

    out = pl.pallas_call(
        ge_kernel,
        out_shape=jax.ShapeDtypeStruct((B, C, HW), x_nchw.dtype),
        grid=grid,
        in_specs=[
            pl.BlockSpec((tb, tc, HW), x_map),   # x block
            pl.BlockSpec((tc, HW), w_map),       # BN-folded depthwise weights
            pl.BlockSpec((tc, 1), s_map),        # folded BN shift (+ conv bias)
        ],
        out_specs=pl.BlockSpec((tb, tc, HW), x_map),
        compiler_params=pltpu.CompilerParams(
            dimension_semantics=("parallel", "parallel"),
            vmem_limit_bytes=vmem_limit,
        ),
    )(x, w_scaled, shift)

    return out.reshape(B, C, H, W)


if __name__ == "__main__":
    layer_idx = 4                      # kernel_size = [-1, 56, 28, 14, 7][4] = 7
    K = [-1, 56, 28, 14, 7][layer_idx]
    B, C = 2, 4

    key = jax.random.PRNGKey(0)
    kx, kw, kb = jax.random.split(key, 3)

    x = jax.random.normal(kx, (B, C, K, K), dtype=jnp.float32)
    conv_w = jax.random.normal(kw, (C, 1, K, K), dtype=jnp.float32) * 0.1
    conv_b = jax.random.normal(kb, (C,), dtype=jnp.float32) * 0.1
    gamma = jnp.ones((C,), jnp.float32)
    beta = jnp.zeros((C,), jnp.float32)
    running_mean = jnp.zeros((C,), jnp.float32)
    running_var = jnp.ones((C,), jnp.float32)

    out = ge_layer(x, conv_w, conv_b, gamma, beta, running_mean, running_var)
    out = jax.block_until_ready(out)

    # Pure-JAX reference check (same eval-mode BN semantics).
    acc = jnp.einsum("bchw,chw->bc", x, conv_w.reshape(C, K, K)) + conv_b
    gate = jax.nn.sigmoid(
        (acc - running_mean) / jnp.sqrt(running_var + 1e-5) * gamma + beta)
    ref = x * gate[:, :, None, None]
    assert jnp.allclose(out, ref, atol=1e-5), "Pallas kernel mismatch vs reference"

    print("KERNEL_OK")
</pallas_src>

<mosaic_0001>
module attributes {stable_mosaic.version = 11 : i64} {
  func.func @ge_kernel(%arg0: i32, %arg1: i32, %arg2: memref<2x4x49xf32, #tpu.memory_space<vmem>>, %arg3: memref<4x49xf32, #tpu.memory_space<vmem>>, %arg4: memref<4x1xf32, #tpu.memory_space<vmem>>, %arg5: memref<2x4x49xf32, #tpu.memory_space<vmem>>) attributes {dimension_semantics = [#tpu.dimension_semantics<parallel>, #tpu.dimension_semantics<parallel>], iteration_bounds = array<i64: 1, 1>, scalar_prefetch = 0 : i64, scratch_operands = 0 : i64, tpu.core_type = #tpu.core_type<tc>, window_params = [{transform_indices = @transform_0, window_bounds = array<i64: 2, 4, 49>}, {transform_indices = @transform_1, window_bounds = array<i64: 4, 49>}, {transform_indices = @transform_2, window_bounds = array<i64: 4, 1>}, {transform_indices = @transform_3, window_bounds = array<i64: 2, 4, 49>}]} {
    %c0 = arith.constant 0 : index
    %c0_0 = arith.constant 0 : index
    %c0_1 = arith.constant 0 : index
    %0 = vector.load %arg2[%c0, %c0_0, %c0_1] : memref<2x4x49xf32, #tpu.memory_space<vmem>>, vector<2x4x49xf32>
    %c0_2 = arith.constant 0 : index
    %c0_3 = arith.constant 0 : index
    %1 = vector.load %arg3[%c0_2, %c0_3] : memref<4x49xf32, #tpu.memory_space<vmem>>, vector<4x49xf32>
    %2 = vector.shape_cast %1 : vector<4x49xf32> to vector<1x4x49xf32>
    %3 = vector.broadcast %2 : vector<1x4x49xf32> to vector<2x4x49xf32>
    %4 = arith.mulf %0, %3 : vector<2x4x49xf32>
    %cst = arith.constant dense<0.000000e+00> : vector<2x4xf32>
    %5 = vector.multi_reduction <add>, %4, %cst [2] : vector<2x4x49xf32> to vector<2x4xf32>
    %6 = vector.shape_cast %5 : vector<2x4xf32> to vector<2x4x1xf32>
    %c0_4 = arith.constant 0 : index
    %c0_5 = arith.constant 0 : index
    %7 = vector.load %arg4[%c0_4, %c0_5] : memref<4x1xf32, #tpu.memory_space<vmem>>, vector<4x1xf32>
    %8 = vector.shape_cast %7 : vector<4x1xf32> to vector<1x4x1xf32>
    %9 = vector.broadcast %8 : vector<1x4x1xf32> to vector<2x4x1xf32>
    %10 = arith.addf %6, %9 : vector<2x4x1xf32>
    %11 = arith.negf %10 : vector<2x4x1xf32>
    %12 = math.exp %11 : vector<2x4x1xf32>
    %cst_6 = arith.constant 1.000000e+00 : f32
    %13 = vector.broadcast %cst_6 : f32 to vector<2x4x1xf32>
    %14 = arith.addf %13, %12 : vector<2x4x1xf32>
    %15 = arith.divf %13, %14 : vector<2x4x1xf32>
    %16 = vector.broadcast %15 : vector<2x4x1xf32> to vector<2x4x49xf32>
    %17 = arith.mulf %0, %16 : vector<2x4x49xf32>
    %c0_7 = arith.constant 0 : index
    %c0_8 = arith.constant 0 : index
    %c0_9 = arith.constant 0 : index
    %18 = vector.load %arg5[%c0_7, %c0_8, %c0_9] : memref<2x4x49xf32, #tpu.memory_space<vmem>>, vector<2x4x49xf32>
    tpu.vector_store %arg5[%c0_7, %c0_8, %c0_9], %17 {strides = array<i32>} : memref<2x4x49xf32, #tpu.memory_space<vmem>>, vector<2x4x49xf32>,
    return
  }
  func.func @transform_0(%arg0: i32, %arg1: i32) -> (i32, i32, i32) {
    %c0_i32 = arith.constant 0 : i32
    %c0_i32_0 = arith.constant 0 : i32
    return %arg0, %arg1, %c0_i32 : i32, i32, i32
  }
  func.func @transform_1(%arg0: i32, %arg1: i32) -> (i32, i32) {
    %c0_i32 = arith.constant 0 : i32
    %c0_i32_0 = arith.constant 0 : i32
    return %arg1, %c0_i32 : i32, i32
  }
  func.func @transform_2(%arg0: i32, %arg1: i32) -> (i32, i32) {
    %c0_i32 = arith.constant 0 : i32
    %c0_i32_0 = arith.constant 0 : i32
    return %arg1, %c0_i32 : i32, i32
  }
  func.func @transform_3(%arg0: i32, %arg1: i32) -> (i32, i32, i32) {
    %c0_i32 = arith.constant 0 : i32
    %c0_i32_0 = arith.constant 0 : i32
    return %arg0, %arg1, %c0_i32 : i32, i32, i32
  }
}

</mosaic_0001>

<llo_original>
// kernel: tpu_custom_call.1
$region0: #{tpu_custom_call.1}
  #allocation0 [shape = 'u32[]', space=smem, size = 0x4, offset = 0x4, fixed_abs, tag = 'smem constant byte address 0x4 - core index']
  #allocation1 [shape = 'u32[144,128]{1,0:T(1,128)}', space=vmem, size = 0x12000, scoped, tag = 'internal scratch']
  %s0 = inlined_call_operand.hbm [shape: f32[2,4,49], index: 0, kind: input, shape index: {}]
  %s1 = inlined_call_operand.vmem [shape: f32[4,49], index: 1, kind: input, shape index: {}]
  %s2 = inlined_call_operand.vmem [shape: f32[4,1], index: 2, kind: input, shape index: {}]
  %s3 = inlined_call_operand.hbm [shape: f32[2,4,49], index: 3, kind: output, shape index: {}]
  %s4 = sld [smem:[#allocation0]]
  $region26: #{tpu_custom_call.1} parent=0
    _
  %s6 = ssub.s32 1, %s4
  %s7 = scalar_select 0, %s6, %s4
  $region1: #{tpu_custom_call.1} parent=0
    #allocation2 [shape = 'u8[4096]{0}', space=vmem, size = 0x1000, scoped, tag = 'input window, operand 0, single buffered']
    #allocation3 [shape = 's32[1]{0}', space=sflag, size = 0x4, scoped, tag = 'scoped memory for tpu_custom_call.1']
    #allocation4 [shape = 's32[1]{0}', space=sflag, size = 0x4, scoped, tag = 'scoped memory for tpu_custom_call.1']
    #allocation5 [shape = 'u8[4096]{0}', space=vmem, size = 0x1000, scoped, tag = 'output window, operand 0, single buffered']
    %8 = vsyncpa [#allocation3], 0
    %9 = vsyncpa [#allocation4], 0
    // Predicated region
    $region2: #{tpu_custom_call.1} parent=1 // pred_check
      _
    $region3: #{tpu_custom_call.1} parent=1 // pred_check_branch
      %11 = sbr.rel (0) target = $region5
    $region4: #{tpu_custom_call.1} parent=1 // pred_region
      %s13 = ssub.s32 128, 128
      %14 = vsyncadd [#allocation3], %s13
      %s15 = sshll.u32 [#allocation2], 4
      %s16 = int_to_ptr.vmem [resolvable:$true] %s15
      %21 = dma.hbm_to_vmem [thread:$0]  %s0, 128, %s16, [#allocation3], 64, 64, 4
    $region5: #{tpu_custom_call.1} parent=1 // pred_fallthru
      _
    // Predicated region
    $region6: #{tpu_custom_call.1} parent=1 // pred_check
      _
    $region7: #{tpu_custom_call.1} parent=1 // pred_check_branch
      %23 = sbr.rel (0) target = $region9
    $region8: #{tpu_custom_call.1} parent=1 // pred_region
      _
    $region9: #{tpu_custom_call.1} parent=1 // pred_fallthru
      _
    // Predicated region
    $region10: #{tpu_custom_call.1} parent=1 // pred_check
      _
    $region11: #{tpu_custom_call.1} parent=1 // pred_check_branch
      %25 = sbr.rel (0) target = $region13
    $region12: #{tpu_custom_call.1} parent=1 // pred_region
      _
    $region13: #{tpu_custom_call.1} parent=1 // pred_fallthru
      _
    // Predicated region
    $region14: #{tpu_custom_call.1} parent=1 // pred_check
      _
    $region15: #{tpu_custom_call.1} parent=1 // pred_check_branch
      %27 = sbr.rel (0) target = $region17
    $region16: #{tpu_custom_call.1} parent=1 // pred_region
      %28 = dma.done [#allocation3], 128
    $region17: #{tpu_custom_call.1} parent=1 // pred_fallthru
      _
    %v29 = vld [vmem:[#allocation2] sm:$0xf]
    %v30 = vld [vmem:[#allocation2 + $0x4] sm:$0xf]
    %v31 = vld [vmem:[%s1] sm:$0xf]
    %v32 = vmul.f32 %v29, %v31
    %v33 = vmul.f32 %v30, %v31
    %vm34 = vcmask 396288
    %v35 = vsel %vm34, %v32, 0.0
    %36 = vadd.xlane.f32.xlu0 %v35
    %v37 = vpop.xlane.xlu0 %36
    %v38 = vsel %vm34, %v33, 0.0
    %39 = vadd.xlane.f32.xlu0 %v38
    %v40 = vpop.xlane.xlu0 %39
    %v41 = vld [vmem:[%s2] sm:$0xf]
    %v42 = vadd.f32 %v37, %v41
    %v43 = vadd.f32 %v40, %v41
    %v44 = vxor.u32 %v42, 2147483648
    %v45 = vxor.u32 %v43, 2147483648
    %v46 = vmul.f32 %v44, 1.442695
    %v47 = vpow.pop %v46
    %v48 = vmul.f32 %v45, 1.442695
    %v49 = vpow.pop %v48
    %v50 = vadd.f32 %v47, 1.0
    %v51 = vadd.f32 %v49, 1.0
    %v52 = vrcp.pop %v50
    %v53 = vmul.f32 1.0, %v52
    %v54 = vrcp.pop %v51
    %v55 = vmul.f32 1.0, %v54
    %57 = vset.pattern.permute.xlu0 0
    %58 = vperm.xlu0 %57, %v53
    %v59 = vpop.permute.xlu0 %58
    %62 = vset.pattern.permute.xlu0 0
    %63 = vperm.xlu0 %62, %v55
    %v64 = vpop.permute.xlu0 %63
    %v66 = vmul.f32 %v29, %v59
    %v67 = vmul.f32 %v30, %v64
    %68 = vst.msk [vmem:[#allocation5] sm:$0xf] %vm34, %v66
    %69 = vst.msk [vmem:[#allocation5 + $0x4] sm:$0xf] %vm34, %v67
    // Predicated region
    $region18: #{tpu_custom_call.1} parent=1 // pred_check
      _
    $region19: #{tpu_custom_call.1} parent=1 // pred_check_branch
      %71 = sbr.rel (0) target = $region21
    $region20: #{tpu_custom_call.1} parent=1 // pred_region
      %s73 = ssub.s32 128, 128
      %74 = vsyncadd [#allocation4], %s73
      %s75 = sshll.u32 [#allocation5], 4
      %s76 = int_to_ptr.vmem [resolvable:$true] %s75
      %81 = dma.vmem_to_hbm [thread:$0]  %s76, 128, %s3, [#allocation4], 64, 64, 4
    $region21: #{tpu_custom_call.1} parent=1 // pred_fallthru
      _
    // Predicated region
    $region22: #{tpu_custom_call.1} parent=1 // pred_check
      _
    $region23: #{tpu_custom_call.1} parent=1 // pred_check_branch
      %83 = sbr.rel (0) target = $region25
    $region24: #{tpu_custom_call.1} parent=1 // pred_region
      %84 = dma.done [#allocation4], 128
    $region25: #{tpu_custom_call.1} parent=1 // pred_fallthru
      _
    %85 = vsyncpa [#allocation3], 1
    %86 = vsyncpa [#allocation4], 1

</llo_original>
